<compile_context>
chip_gen: v7x
topology: tpu7x:2x2x1
jax: 0.10.0
libtpu: 0.0.40
codegen_flags: <defaults>
</compile_context>

<pallas_src>
import functools

import jax
import jax.numpy as jnp
from jax import lax
from jax.experimental import pallas as pl
from jax.experimental.pallas import tpu as pltpu


def _pick_tile(dim, preferred, step=128):
    """Largest multiple of `step` <= preferred that divides dim, else dim itself."""
    if dim <= preferred:
        return dim
    t = (preferred // step) * step
    while t >= step:
        if dim % t == 0:
            return t
        t -= step
    return dim


# --------------------------------------------------------------------------
# Tiled linear: y = x @ W (+ b), f32 accumulation, optional bias
# --------------------------------------------------------------------------
def _linear_kernel(*refs, has_bias):
    if has_bias:
        x_ref, w_ref, b_ref, o_ref, acc_ref = refs
    else:
        x_ref, w_ref, o_ref, acc_ref = refs
        b_ref = None

    @pl.when(pl.program_id(2) == 0)
    def _():
        acc_ref[...] = jnp.zeros_like(acc_ref)

    acc_ref[...] += jnp.dot(x_ref[...], w_ref[...],
                            preferred_element_type=jnp.float32)

    @pl.when(pl.program_id(2) == pl.num_programs(2) - 1)
    def _():
        acc = acc_ref[...]
        if b_ref is not None:
            acc = acc + b_ref[...].astype(jnp.float32)
        o_ref[...] = acc.astype(o_ref.dtype)


def linear(x, w, b=None, *, tm=256, tn=256, tk=256):
    """x: (M, K), w: (K, N), b: (N,) or None -> (M, N)."""
    M, K = x.shape
    K2, N = w.shape
    assert K == K2
    tm = _pick_tile(M, tm, step=8)
    tn = _pick_tile(N, tn, step=128)
    tk = _pick_tile(K, tk, step=128)
    assert M % tm == 0 and N % tn == 0 and K % tk == 0

    has_bias = b is not None
    in_specs = [
        pl.BlockSpec((tm, tk), lambda i, j, k: (i, k)),
        pl.BlockSpec((tk, tn), lambda i, j, k: (k, j)),
    ]
    args = [x, w]
    if has_bias:
        in_specs.append(pl.BlockSpec((1, tn), lambda i, j, k: (0, j)))
        args.append(b.reshape(1, N))

    itemsize = jnp.dtype(x.dtype).itemsize
    cost = pl.CostEstimate(
        flops=2 * M * N * K,
        transcendentals=0,
        bytes_accessed=int(itemsize * (M * K * (N // tn)      # x re-read per j tile
                                       + K * N * (M // tm)    # w re-read per i tile
                                       + M * N)),             # output
    )

    return pl.pallas_call(
        functools.partial(_linear_kernel, has_bias=has_bias),
        out_shape=jax.ShapeDtypeStruct((M, N), x.dtype),
        grid_spec=pltpu.PrefetchScalarGridSpec(
            num_scalar_prefetch=0,
            grid=(M // tm, N // tn, K // tk),
            in_specs=in_specs,
            out_specs=pl.BlockSpec((tm, tn), lambda i, j, k: (i, j)),
            scratch_shapes=[pltpu.VMEM((tm, tn), jnp.float32)],
        ),
        compiler_params=pltpu.CompilerParams(
            dimension_semantics=("parallel", "parallel", "arbitrary")),
        cost_estimate=cost,
    )(*args)


# --------------------------------------------------------------------------
# Flash attention, all heads batched per step, reading directly from the
# fused (B, N, 3C) qkv activation and writing (B, N, C) output (no transposes).
# --------------------------------------------------------------------------
def _flash_attn_kernel(q_ref, k_ref, v_ref, o_ref, qs_sc, m_sc, l_sc, acc_sc,
                       *, scale, num_heads, head_dim):
    kv = pl.program_id(2)

    @pl.when(kv == 0)
    def _():
        # Hoist q*scale out of the kv loop: once per q tile, in compute dtype
        # (matches torch `q = q * self.scale` before the matmul).
        qs_sc[...] = q_ref[0] * jnp.asarray(scale, dtype=q_ref.dtype)
        m_sc[...] = jnp.full_like(m_sc, -jnp.inf)
        l_sc[...] = jnp.zeros_like(l_sc)
        acc_sc[...] = jnp.zeros_like(acc_sc)

    for h in range(num_heads):
        sl = pl.ds(h * head_dim, head_dim)
        q_h = qs_sc[:, sl]                       # (tq, D), compute dtype, pre-scaled
        k_h = k_ref[0, :, sl]                    # (tk, D)
        v_h = v_ref[0, :, sl]                    # (tk, D)

        # Scores in f32 (torch casts attn to float32 before softmax).
        s = lax.dot_general(q_h, k_h,
                            dimension_numbers=(((1,), (1,)), ((), ())),
                            preferred_element_type=jnp.float32)   # (tq, tk)

        m_prev = m_sc[h]                                          # (tq, 1)
        m_new = jnp.maximum(m_prev, s.max(axis=-1, keepdims=True))
        alpha = jnp.exp(m_prev - m_new)
        p = jnp.exp(s - m_new)
        l_sc[h] = alpha * l_sc[h] + p.sum(axis=-1, keepdims=True)
        # torch casts the softmax back to the compute dtype before attn @ v.
        acc_sc[h] = alpha * acc_sc[h] + lax.dot_general(
            p.astype(v_h.dtype), v_h,
            dimension_numbers=(((1,), (0,)), ((), ())),
            preferred_element_type=jnp.float32)                   # (tq, D)
        m_sc[h] = m_new

    @pl.when(kv == pl.num_programs(2) - 1)
    def _():
        for h in range(num_heads):
            l_h = l_sc[h]
            inv_l = pl.reciprocal(l_h, approx=True)
            inv_l = inv_l * (2.0 - l_h * inv_l)   # one Newton step -> ~f32 exact
            o_ref[0, :, pl.ds(h * head_dim, head_dim)] = (
                acc_sc[h] * inv_l).astype(o_ref.dtype)


def flash_attention_fused(qkv, *, num_heads, head_dim, scale, tq=128, tk=256):
    """qkv: (B, N, 3C) with last dim ordered (3, H, D).  Returns (B, N, C)."""
    B, N, C3 = qkv.shape
    C = num_heads * head_dim
    assert C3 == 3 * C
    assert C % 128 == 0, "C must be a multiple of the 128-lane width"
    tq = _pick_tile(N, tq, step=128)
    tk = _pick_tile(N, tk, step=128)
    dtype = qkv.dtype
    itemsize = jnp.dtype(dtype).itemsize
    n_q_tiles = N // tq
    cost = pl.CostEstimate(
        flops=4 * B * num_heads * N * N * head_dim,
        transcendentals=int(2 * B * num_heads * N * N),
        bytes_accessed=int(itemsize * (B * N * C                     # q once
                                       + 2 * B * N * C * n_q_tiles   # k,v per q tile
                                       + B * N * C)),                # output
    )

    kernel = functools.partial(_flash_attn_kernel, scale=scale,
                               num_heads=num_heads, head_dim=head_dim)
    return pl.pallas_call(
        kernel,
        out_shape=jax.ShapeDtypeStruct((B, N, C), dtype),
        grid_spec=pltpu.PrefetchScalarGridSpec(
            num_scalar_prefetch=0,
            grid=(B, N // tq, N // tk),
            in_specs=[
                # Same array passed 3x; index_maps pick the q / k / v slab of 3C.
                pl.BlockSpec((1, tq, C), lambda b, qi, ki: (b, qi, 0)),
                pl.BlockSpec((1, tk, C), lambda b, qi, ki: (b, ki, 1)),
                pl.BlockSpec((1, tk, C), lambda b, qi, ki: (b, ki, 2)),
            ],
            out_specs=pl.BlockSpec((1, tq, C), lambda b, qi, ki: (b, qi, 0)),
            scratch_shapes=[
                pltpu.VMEM((tq, C), dtype),                            # scaled q
                pltpu.VMEM((num_heads, tq, 1), jnp.float32),           # running max
                pltpu.VMEM((num_heads, tq, 1), jnp.float32),           # running denom
                pltpu.VMEM((num_heads, tq, head_dim), jnp.float32),    # output acc
            ],
        ),
        compiler_params=pltpu.CompilerParams(
            dimension_semantics=("parallel", "parallel", "arbitrary")),
        cost_estimate=cost,
    )(qkv, qkv, qkv)


# --------------------------------------------------------------------------
# SeqParallelAttention forward (sequence-parallel world size = 1)
# --------------------------------------------------------------------------
def seq_parallel_attention(x, w_qkv, b_qkv, w_proj, b_proj, *, num_heads):
    """x: (B, N, C).  Weights stored as (in_features, out_features)."""
    B, N, C = x.shape
    assert C % num_heads == 0
    D = C // num_heads
    scale = D ** -0.5

    # TODO(synk): the two all_to_all collectives over the sequence-parallel group
    # are identities for sp world size 1 and are elided here.

    # QKV projection; bias path skipped entirely when b_qkv is None (qkv_bias=False).
    qkv = linear(x.reshape(B * N, C), w_qkv, b_qkv)        # (B*N, 3C)
    qkv = qkv.reshape(B, N, 3 * C)                         # free view: (3, H, D) on last dim

    # Flash attention reads q/k/v straight from qkv and writes (B, N, H*D).
    # q_norm / k_norm are Identity (qk_norm=False); attn_drop p=0 -> identity.
    o = flash_attention_fused(qkv, num_heads=num_heads, head_dim=D, scale=scale)

    # Output projection; proj_drop p=0 -> identity.
    out = linear(o.reshape(B * N, C), w_proj, b_proj)      # (B*N, C)
    return out.reshape(B, N, C)


# --------------------------------------------------------------------------
# Pure-JAX reference mirroring the PyTorch forward (sp size 1, eval mode)
# --------------------------------------------------------------------------
def _reference(x, w_qkv, b_qkv, w_proj, b_proj, *, num_heads):
    B, N, C = x.shape
    D = C // num_heads
    scale = D ** -0.5
    qkv = x.reshape(B * N, C) @ w_qkv
    if b_qkv is not None:
        qkv = qkv + b_qkv
    qkv = qkv.reshape(B, N, 3, num_heads, D)
    qkv = jnp.transpose(qkv, (2, 0, 3, 1, 4))
    q, k, v = qkv[0], qkv[1], qkv[2]                       # (B, H, N, D)
    q = q * jnp.asarray(scale, x.dtype)
    attn = jnp.einsum('bhqd,bhkd->bhqk', q, k).astype(jnp.float32)
    attn = jax.nn.softmax(attn, axis=-1).astype(x.dtype)
    o = jnp.einsum('bhqk,bhkd->bhqd', attn, v)
    o = jnp.transpose(o, (0, 2, 1, 3)).reshape(B * N, C)
    return (o @ w_proj + b_proj).reshape(B, N, C)


if __name__ == "__main__":
    # Shapes kept small but lane-aligned (C and N multiples of 128).
    B, N, C = 2, 128, 128
    num_heads = 4

    key = jax.random.PRNGKey(0)
    kx, kwq, kwp, kbp = jax.random.split(key, 4)

    x = jax.random.normal(kx, (B, N, C), jnp.float32)
    # nn.Linear weights are (out, in); stored here pre-transposed to (in, out).
    w_qkv = jax.random.normal(kwq, (C, 3 * C), jnp.float32) * 0.05
    b_qkv = None                                           # qkv_bias=False (default)
    w_proj = jax.random.normal(kwp, (C, C), jnp.float32) * 0.05
    b_proj = jax.random.normal(kbp, (C,), jnp.float32) * 0.05

    # --- f32 path --------------------------------------------------------
    out = seq_parallel_attention(x, w_qkv, b_qkv, w_proj, b_proj,
                                 num_heads=num_heads)
    out = jax.block_until_ready(out)
    ref = _reference(x, w_qkv, b_qkv, w_proj, b_proj, num_heads=num_heads)
    assert out.shape == (B, N, C)
    assert bool(jnp.allclose(out, ref, atol=2e-3, rtol=2e-3)), "f32 mismatch vs reference"

    # --- bf16 path (native MXU dtype on v5e/v6e/v7x) ---------------------
    xb = x.astype(jnp.bfloat16)
    wqb = w_qkv.astype(jnp.bfloat16)
    wpb = w_proj.astype(jnp.bfloat16)
    bpb = b_proj.astype(jnp.bfloat16)
    out_bf = seq_parallel_attention(xb, wqb, None, wpb, bpb, num_heads=num_heads)
    out_bf = jax.block_until_ready(out_bf)
    ref_bf = _reference(xb.astype(jnp.float32), wqb.astype(jnp.float32), None,
                        wpb.astype(jnp.float32), bpb.astype(jnp.float32),
                        num_heads=num_heads)
    assert bool(jnp.allclose(out_bf.astype(jnp.float32), ref_bf,
                             atol=2e-2, rtol=2e-2)), "bf16 mismatch vs reference"

    print("KERNEL_OK")
</pallas_src>

<mosaic_0001>
module attributes {stable_mosaic.version = 11 : i64} {
  func.func @_linear_kernel(%arg0: i32, %arg1: i32, %arg2: i32, %arg3: memref<256x128xf32, #tpu.memory_space<vmem>>, %arg4: memref<128x128xf32, #tpu.memory_space<vmem>>, %arg5: memref<256x128xf32, #tpu.memory_space<vmem>>, %arg6: memref<256x128xf32, #tpu.memory_space<vmem>>) attributes {dimension_semantics = [#tpu.dimension_semantics<parallel>, #tpu.dimension_semantics<parallel>, #tpu.dimension_semantics<arbitrary>], iteration_bounds = array<i64: 1, 3, 1>, scalar_prefetch = 0 : i64, scratch_operands = 1 : i64, tpu.core_type = #tpu.core_type<tc>, window_params = [{transform_indices = @transform_0, window_bounds = array<i64: 256, 128>}, {transform_indices = @transform_1, window_bounds = array<i64: 128, 128>}, {transform_indices = @transform_2, window_bounds = array<i64: 256, 128>}]} {
    %c0_i32 = arith.constant 0 : i32
    %0 = arith.cmpi eq, %arg2, %c0_i32 : i32
    %1 = arith.extui %0 : i1 to i32
    %c0_i32_0 = arith.constant 0 : i32
    %2 = arith.cmpi ne, %1, %c0_i32_0 : i32
    scf.if %2 {
      %cst_10 = arith.constant 0.000000e+00 : f32
      %12 = vector.broadcast %cst_10 : f32 to vector<256x128xf32>
      %c0_11 = arith.constant 0 : index
      %c0_12 = arith.constant 0 : index
      %13 = vector.load %arg6[%c0_11, %c0_12] : memref<256x128xf32, #tpu.memory_space<vmem>>, vector<256x128xf32>
      tpu.vector_store %arg6[%c0_11, %c0_12], %12 {strides = array<i32>} : memref<256x128xf32, #tpu.memory_space<vmem>>, vector<256x128xf32>,
    } else {
    }
    %c0 = arith.constant 0 : index
    %c0_1 = arith.constant 0 : index
    %3 = vector.load %arg6[%c0, %c0_1] : memref<256x128xf32, #tpu.memory_space<vmem>>, vector<256x128xf32>
    %c0_2 = arith.constant 0 : index
    %c0_3 = arith.constant 0 : index
    %4 = vector.load %arg3[%c0_2, %c0_3] : memref<256x128xf32, #tpu.memory_space<vmem>>, vector<256x128xf32>
    %c0_4 = arith.constant 0 : index
    %c0_5 = arith.constant 0 : index
    %5 = vector.load %arg4[%c0_4, %c0_5] : memref<128x128xf32, #tpu.memory_space<vmem>>, vector<128x128xf32>
    %cst = arith.constant dense<0.000000e+00> : vector<256x128xf32>
    %6 = tpu.matmul %4, %5, %cst {dimension_numbers = #tpu.dot_dimension_numbers<[1], [0], [0], [1], [0, 0, 1, 1], [], []>} : vector<256x128xf32>, vector<128x128xf32>, vector<256x128xf32> -> vector<256x128xf32>
    %7 = arith.addf %3, %6 : vector<256x128xf32>
    %c0_6 = arith.constant 0 : index
    %c0_7 = arith.constant 0 : index
    %8 = vector.load %arg6[%c0_6, %c0_7] : memref<256x128xf32, #tpu.memory_space<vmem>>, vector<256x128xf32>
    tpu.vector_store %arg6[%c0_6, %c0_7], %7 {strides = array<i32>} : memref<256x128xf32, #tpu.memory_space<vmem>>, vector<256x128xf32>,
    %c0_i32_8 = arith.constant 0 : i32
    %9 = arith.cmpi eq, %arg2, %c0_i32_8 : i32
    %10 = arith.extui %9 : i1 to i32
    %c0_i32_9 = arith.constant 0 : i32
    %11 = arith.cmpi ne, %10, %c0_i32_9 : i32
    scf.if %11 {
      %c0_10 = arith.constant 0 : index
      %c0_11 = arith.constant 0 : index
      %12 = vector.load %arg6[%c0_10, %c0_11] : memref<256x128xf32, #tpu.memory_space<vmem>>, vector<256x128xf32>
      %c0_12 = arith.constant 0 : index
      %c0_13 = arith.constant 0 : index
      %13 = vector.load %arg5[%c0_12, %c0_13] : memref<256x128xf32, #tpu.memory_space<vmem>>, vector<256x128xf32>
      tpu.vector_store %arg5[%c0_12, %c0_13], %12 {strides = array<i32>} : memref<256x128xf32, #tpu.memory_space<vmem>>, vector<256x128xf32>,
    } else {
    }
    return
  }
  func.func @transform_0(%arg0: i32, %arg1: i32, %arg2: i32) -> (i32, i32) {
    %c0_i32 = arith.constant 0 : i32
    return %arg0, %arg2 : i32, i32
  }
  func.func @transform_1(%arg0: i32, %arg1: i32, %arg2: i32) -> (i32, i32) {
    %c0_i32 = arith.constant 0 : i32
    return %arg2, %arg1 : i32, i32
  }
  func.func @transform_2(%arg0: i32, %arg1: i32, %arg2: i32) -> (i32, i32) {
    %c0_i32 = arith.constant 0 : i32
    return %arg0, %arg1 : i32, i32
  }
}

</mosaic_0001>

<llo_original>
// kernel: tpu_custom_call.1
$region0: #{tpu_custom_call.1}
  #allocation0 [shape = 'u32[]', space=smem, size = 0x4, offset = 0x4, fixed_abs, tag = 'smem constant byte address 0x4 - core index']
  #allocation1 [shape = 'u32[144,128]{1,0:T(1,128)}', space=vmem, size = 0x12000, scoped, tag = 'internal scratch']
  #allocation2 [shape = 'f32[256,128]{1,0:T(8,128)}', space=vmem, size = 0x20000, scoped, tag = 'scratch operand']
  %s0 = inlined_call_operand.hbm [shape: f32[256,128], index: 0, kind: input, shape index: {}]
  %s1 = inlined_call_operand.hbm [shape: f32[128,384], index: 1, kind: input, shape index: {}]
  %s2 = inlined_call_operand.hbm [shape: f32[256,384], index: 2, kind: output, shape index: {}]
  %s3 = sld [smem:[#allocation0]]
  $region57: #{tpu_custom_call.1} parent=0
    _
  %s5 = ssub.s32 1, %s3
  %s6 = scalar_select 0, %s5, %s3
  $region1: #{tpu_custom_call.1} parent=0
    #allocation3 [shape = 'u8[131072]{0}', space=vmem, size = 0x20000, scoped, tag = 'input window, operand 0, single buffered']
    #allocation4 [shape = 's32[2]{0}', space=sflag, size = 0x8, scoped, tag = 'scoped memory for tpu_custom_call.1']
    #allocation5 [shape = 's32[2]{0}', space=sflag, size = 0x8, scoped, tag = 'scoped memory for tpu_custom_call.1']
    #allocation6 [shape = 'u8[131072]{0}', space=vmem, size = 0x20000, scoped, tag = 'input window, operand 1']
    #allocation7 [shape = 's32[2]{0}', space=sflag, size = 0x8, scoped, tag = 'scoped memory for tpu_custom_call.1']
    #allocation8 [shape = 'u8[262144]{0}', space=vmem, size = 0x40000, scoped, tag = 'output window, operand 0']
    %7 = vsyncpa [#allocation4], 0
    %8 = vsyncpa [#allocation7], 0
    %s9 = scalar_lea.sflag [#allocation7], 1
    %10 = vsyncpa %s9, 0
    %11 = vsyncpa [#allocation5], 0
    %s12 = scalar_lea.sflag [#allocation5], 1
    %13 = vsyncpa %s12, 0
    loop: start=0, step=1, limit=5
    $region2: #{tpu_custom_call.1} parent=1 // loop_pre_header
      _
    $region3: #{tpu_custom_call.1} parent=1 // loop_header
      %s15 = sphi 0, %s19
      %p16 = scmp.ge.s32.totalorder %s15, 5
      %s22 = sphi 0, %s41
      %s23 = sphi 0, %s37
      %s24 = sphi 0, %s33
      %s25 = sphi 0, %s22
      %s26 = sphi 0, %s23
      %s27 = sphi 0, %s24
      %s28 = sphi 0, %s25
      %s29 = sphi 0, %s26
      %s30 = sphi 0, %s27
      %s46 = sphi 0, %s48
      %s49 = sphi 0, %s46
      %s50 = sphi 0, %s49
      %s66 = sphi 0, %s50
      %s74 = sphi 0, %s76
      %s77 = sphi 0, %s74
      %s78 = sphi 0, %s77
      %s94 = sphi 0, %s78
      %s102 = sphi 0, %s104
      %s105 = sphi 0, %s102
      %s106 = sphi 0, %s105
      %s122 = sphi 0, %s106
    $region4: #{tpu_custom_call.1} parent=1 // loop_header_branch
      %18 = sbr.rel (%p16) target = $region8
    $region5: #{tpu_custom_call.1} parent=1 // loop_body
      %s20 = ssub.s32 %s15, 1
      %s21 = ssub.s32 %s15, 2
      %s31 = sadd.s32 1, %s24
      %p32 = scmp.ge.s32.totalorder %s31, 1
      %s33 = scalar_select %p32, 0, %s31
      %s34 = sadd.s32 1, %s23
      %s35 = scalar_select %p32, %s34, %s23
      %p36 = scmp.ge.s32.totalorder %s35, 3
      %s37 = scalar_select %p36, 0, %s35
      %s38 = sadd.s32 1, %s22
      %s39 = scalar_select %p36, %s38, %s22
      %p40 = scmp.ge.s32.totalorder %s39, 1
      %s41 = scalar_select %p40, 0, %s39
      %s42 = ssub.s32 %s22, %s41
      %s43 = ssub.s32 %s24, %s33
      %s44 = sor.u32 %s42, %s43
      %p45 = scmp.eq.s32.totalorder %s44, 0
      %s47 = sadd.s32 %s46, 1
      %s48 = scalar_select %p45, %s46, %s47
      %p51 = pneg %p45
      %p52 = scmp.eq.s32.totalorder %s15, 2
      %p53 = por %p51, %p52
      %p54 = scmp.ne.s32.totalorder %s46, %s49
      %p55 = scmp.eq.s32.totalorder %s15, 0
      %p56 = por %p54, %p55
      %p57 = scmp.ne.s32.totalorder %s46, %s49
      %p58 = scmp.eq.s32.totalorder %s20, 2
      %p59 = por %p57, %p58
      %p60 = scmp.ne.s32.totalorder %s49, %s50
      %p61 = scmp.eq.s32.totalorder %s20, 0
      %p62 = por %p60, %p61
      %p63 = scmp.ne.s32.totalorder %s49, %s50
      %p64 = scmp.eq.s32.totalorder %s21, 2
      %p65 = por %p63, %p64
      %p67 = scmp.ne.s32.totalorder %s50, %s66
      %p68 = scmp.eq.s32.totalorder %s21, 0
      %p69 = por %p67, %p68
      %s70 = ssub.s32 %s24, %s33
      %s71 = ssub.s32 %s23, %s37
      %s72 = sor.u32 %s70, %s71
      %p73 = scmp.eq.s32.totalorder %s72, 0
      %s75 = sadd.s32 %s74, 1
      %s76 = scalar_select %p73, %s74, %s75
      %p79 = pneg %p73
      %p80 = scmp.eq.s32.totalorder %s15, 2
      %p81 = por %p79, %p80
      %p82 = scmp.ne.s32.totalorder %s74, %s77
      %p83 = scmp.eq.s32.totalorder %s15, 0
      %p84 = por %p82, %p83
      %p85 = scmp.ne.s32.totalorder %s74, %s77
      %p86 = scmp.eq.s32.totalorder %s20, 2
      %p87 = por %p85, %p86
      %p88 = scmp.ne.s32.totalorder %s77, %s78
      %p89 = scmp.eq.s32.totalorder %s20, 0
      %p90 = por %p88, %p89
      %p91 = scmp.ne.s32.totalorder %s77, %s78
      %p92 = scmp.eq.s32.totalorder %s21, 2
      %p93 = por %p91, %p92
      %p95 = scmp.ne.s32.totalorder %s78, %s94
      %p96 = scmp.eq.s32.totalorder %s21, 0
      %p97 = por %p95, %p96
      %s98 = ssub.s32 %s22, %s41
      %s99 = ssub.s32 %s23, %s37
      %s100 = sor.u32 %s98, %s99
      %p101 = scmp.eq.s32.totalorder %s100, 0
      %s103 = sadd.s32 %s102, 1
      %s104 = scalar_select %p101, %s102, %s103
      %p107 = pneg %p101
      %p108 = scmp.eq.s32.totalorder %s15, 2
      %p109 = por %p107, %p108
      %p110 = scmp.ne.s32.totalorder %s102, %s105
      %p111 = scmp.eq.s32.totalorder %s15, 0
      %p112 = por %p110, %p111
      %p113 = scmp.ne.s32.totalorder %s102, %s105
      %p114 = scmp.eq.s32.totalorder %s20, 2
      %p115 = por %p113, %p114
      %p116 = scmp.ne.s32.totalorder %s105, %s106
      %p117 = scmp.eq.s32.totalorder %s20, 0
      %p118 = por %p116, %p117
      %p119 = scmp.ne.s32.totalorder %s105, %s106
      %p120 = scmp.eq.s32.totalorder %s21, 2
      %p121 = por %p119, %p120
      %p123 = scmp.ne.s32.totalorder %s106, %s122
      %p124 = scmp.eq.s32.totalorder %s21, 0
      %p125 = por %p123, %p124
      %p126 = scmp.le.s32.totalorder 1, %s15
      %p127 = scmp.lt.s32.totalorder %s15, 4
      %p128 = pnand %p126, %p127
      %p129 = pneg %p128
      // Predicated region
      $region9: #{tpu_custom_call.1} parent=5 // pred_check
        _
      $region10: #{tpu_custom_call.1} parent=5 // pred_check_branch
        %131 = sbr.rel (%p128) target = $region12
      $region11: #{tpu_custom_call.1} parent=5 // pred_region
        %s132 = ssub.s32 %s15, 1
        // Predicated region
        $region13: #{tpu_custom_call.1} parent=11 // pred_check
          %p133 = pneg %p62
        $region14: #{tpu_custom_call.1} parent=11 // pred_check_branch
          %135 = sbr.rel (%p133) target = $region16
        $region15: #{tpu_custom_call.1} parent=11 // pred_region
          %s136 = smul.u32 32, %s25
          %s138 = ssub.s32 4096, 4096
          %139 = vsyncadd [#allocation4], %s138
          %s140 = sadd.s32 %s27, %s136
          %s141 = smul.addr %s140, 128
          %s142 = scalar_lea.hbm %s0, %s141
          %s143 = sshll.u32 [#allocation3], 4
          %s144 = int_to_ptr.vmem [resolvable:$true] %s143
          %149 = dma.hbm_to_vmem [thread:$0]  %s142, 4096, %s144, [#allocation4], 128, 128, 8
        $region16: #{tpu_custom_call.1} parent=11 // pred_fallthru
          _
      $region12: #{tpu_custom_call.1} parent=5 // pred_fallthru
        _
      %p150 = scmp.lt.s32.totalorder %s15, 3
      // Predicated region
      $region17: #{tpu_custom_call.1} parent=5 // pred_check
        %p151 = pneg %p150
      $region18: #{tpu_custom_call.1} parent=5 // pred_check_branch
        %153 = sbr.rel (%p151) target = $region20
      $region19: #{tpu_custom_call.1} parent=5 // pred_region
        // Predicated region
        $region21: #{tpu_custom_call.1} parent=19 // pred_check
          %p154 = pneg %p84
        $region22: #{tpu_custom_call.1} parent=19 // pred_check_branch
          %156 = sbr.rel (%p154) target = $region24
        $region23: #{tpu_custom_call.1} parent=19 // pred_region
          %s157 = sand.u32 %s74, 1
          %s158 = scalar_lea.sflag [#allocation7], %s157
          %s159 = sand.u32 %s74, 1
          %s160 = smul.addr %s159, 128
          %s161 = scalar_lea.vmem [#allocation6], %s160
          %s162 = smul.u32 16, %s24
          %s164 = ssub.s32 2048, 2048
          %165 = vsyncadd %s158, %s164
          %s166 = smul.addr %s162, 3
          %s167 = sadd.s32 %s23, %s166
          %s168 = smul.addr %s167, 128
          %s169 = scalar_lea.hbm %s1, %s168
          %s170 = sshll.u32 %s161, 4
          %s171 = int_to_ptr.vmem [resolvable:$true] %s170
          %176 = dma.hbm_to_vmem [thread:$0]  %s169, 2048, %s171, %s158, 384, 128, 8
        $region24: #{tpu_custom_call.1} parent=19 // pred_fallthru
          _
      $region20: #{tpu_custom_call.1} parent=5 // pred_fallthru
        _
      %p177 = scmp.le.s32.totalorder 1, %s15
      %p178 = scmp.lt.s32.totalorder %s15, 4
      %p179 = pnand %p177, %p178
      %p180 = pneg %p179
      // Predicated region
      $region25: #{tpu_custom_call.1} parent=5 // pred_check
        _
      $region26: #{tpu_custom_call.1} parent=5 // pred_check_branch
        %182 = sbr.rel (%p179) target = $region28
      $region27: #{tpu_custom_call.1} parent=5 // pred_region
        %s183 = ssub.s32 %s15, 1
        // Predicated region
        $region29: #{tpu_custom_call.1} parent=27 // pred_check
          %p184 = pneg %p62
        $region30: #{tpu_custom_call.1} parent=27 // pred_check_branch
          %186 = sbr.rel (%p184) target = $region32
        $region31: #{tpu_custom_call.1} parent=27 // pred_region
          %187 = dma.done [#allocation4], 4096
        $region32: #{tpu_custom_call.1} parent=27 // pred_fallthru
          _
        %s188 = sand.u32 %s77, 1
        %s189 = scalar_lea.sflag [#allocation7], %s188
        %s190 = sand.u32 %s77, 1
        %s191 = smul.addr %s190, 128
        %s192 = scalar_lea.vmem [#allocation6], %s191
        // Predicated region
        $region33: #{tpu_custom_call.1} parent=27 // pred_check
          %p193 = pneg %p90
        $region34: #{tpu_custom_call.1} parent=27 // pred_check_branch
          %195 = sbr.rel (%p193) target = $region36
        $region35: #{tpu_custom_call.1} parent=27 // pred_region
          %196 = dma.done %s189, 2048
        $region36: #{tpu_custom_call.1} parent=27 // pred_fallthru
          _
        %p197 = pneg %p62
        %p198 = pneg %p59
        %s199 = sand.u32 %s77, 1
        %s200 = scalar_lea.sflag [#allocation7], %s199
        %s201 = sand.u32 %s77, 1
        %s202 = smul.addr %s201, 128
        %s203 = scalar_lea.vmem [#allocation6], %s202
        %p204 = pneg %p90
        %p205 = pneg %p87
        %p206 = pneg %p118
        %p207 = pneg %p115
        %s208 = sand.u32 %s105, 1
        %s209 = scalar_lea.sflag [#allocation5], %s208
        %s210 = sand.u32 %s105, 1
        %s211 = smul.addr %s210, 256
        %s212 = scalar_lea.vmem [#allocation8], %s211
        %s213 = smul.u32 32, %s25
        %s214 = smul.u32 16, %s27
        %s215 = smul.u32 32, %s25
        %p216 = scmp.eq.s32.totalorder %s27, 0
        // Predicated region
        $region37: #{tpu_custom_call.1} parent=27 // pred_check
          %p217 = pneg %p216
        $region38: #{tpu_custom_call.1} parent=27 // pred_check_branch
          %219 = sbr.rel (%p217) target = $region40
        $region39: #{tpu_custom_call.1} parent=27 // pred_region
          %220 = vst [vmem:[#allocation2] sm:$0xff] 0.0
          %221 = vst [vmem:[#allocation2 + $0x8] sm:$0xff] 0.0
          %222 = vst [vmem:[#allocation2 + $0x10] sm:$0xff] 0.0
          %223 = vst [vmem:[#allocation2 + $0x18] sm:$0xff] 0.0
          %224 = vst [vmem:[#allocation2 + $0x20] sm:$0xff] 0.0
          %225 = vst [vmem:[#allocation2 + $0x28] sm:$0xff] 0.0
          %226 = vst [vmem:[#allocation2 + $0x30] sm:$0xff] 0.0
          %227 = vst [vmem:[#allocation2 + $0x38] sm:$0xff] 0.0
          %228 = vst [vmem:[#allocation2 + $0x40] sm:$0xff] 0.0
          %229 = vst [vmem:[#allocation2 + $0x48] sm:$0xff] 0.0
          %230 = vst [vmem:[#allocation2 + $0x50] sm:$0xff] 0.0
          %231 = vst [vmem:[#allocation2 + $0x58] sm:$0xff] 0.0
          %232 = vst [vmem:[#allocation2 + $0x60] sm:$0xff] 0.0
          %233 = vst [vmem:[#allocation2 + $0x68] sm:$0xff] 0.0
          %234 = vst [vmem:[#allocation2 + $0x70] sm:$0xff] 0.0
          %235 = vst [vmem:[#allocation2 + $0x78] sm:$0xff] 0.0
          %236 = vst [vmem:[#allocation2 + $0x80] sm:$0xff] 0.0
          %237 = vst [vmem:[#allocation2 + $0x88] sm:$0xff] 0.0
          %238 = vst [vmem:[#allocation2 + $0x90] sm:$0xff] 0.0
          %239 = vst [vmem:[#allocation2 + $0x98] sm:$0xff] 0.0
          %240 = vst [vmem:[#allocation2 + $0xa0] sm:$0xff] 0.0
          %241 = vst [vmem:[#allocation2 + $0xa8] sm:$0xff] 0.0
          %242 = vst [vmem:[#allocation2 + $0xb0] sm:$0xff] 0.0
          %243 = vst [vmem:[#allocation2 + $0xb8] sm:$0xff] 0.0
          %244 = vst [vmem:[#allocation2 + $0xc0] sm:$0xff] 0.0
          %245 = vst [vmem:[#allocation2 + $0xc8] sm:$0xff] 0.0
          %246 = vst [vmem:[#allocation2 + $0xd0] sm:$0xff] 0.0
          %247 = vst [vmem:[#allocation2 + $0xd8] sm:$0xff] 0.0
          %248 = vst [vmem:[#allocation2 + $0xe0] sm:$0xff] 0.0
          %249 = vst [vmem:[#allocation2 + $0xe8] sm:$0xff] 0.0
          %250 = vst [vmem:[#allocation2 + $0xf0] sm:$0xff] 0.0
          %251 = vst [vmem:[#allocation2 + $0xf8] sm:$0xff] 0.0
        $region40: #{tpu_custom_call.1} parent=27 // pred_fallthru
          _
        %v252 = vld [vmem:[#allocation2] sm:$0xff]
        %v253 = vld [vmem:[#allocation2 + $0x8] sm:$0xff]
        %v254 = vld [vmem:[#allocation2 + $0x10] sm:$0xff]
        %v255 = vld [vmem:[#allocation2 + $0x18] sm:$0xff]
        %v256 = vld [vmem:[#allocation2 + $0x20] sm:$0xff]
        %v257 = vld [vmem:[#allocation2 + $0x28] sm:$0xff]
        %v258 = vld [vmem:[#allocation2 + $0x30] sm:$0xff]
        %v259 = vld [vmem:[#allocation2 + $0x38] sm:$0xff]
        %v260 = vld [vmem:[#allocation2 + $0x40] sm:$0xff]
        %v261 = vld [vmem:[#allocation2 + $0x48] sm:$0xff]
        %v262 = vld [vmem:[#allocation2 + $0x50] sm:$0xff]
        %v263 = vld [vmem:[#allocation2 + $0x58] sm:$0xff]
        %v264 = vld [vmem:[#allocation2 + $0x60] sm:$0xff]
        %v265 = vld [vmem:[#allocation2 + $0x68] sm:$0xff]
        %v266 = vld [vmem:[#allocation2 + $0x70] sm:$0xff]
        %v267 = vld [vmem:[#allocation2 + $0x78] sm:$0xff]
        %v268 = vld [vmem:[#allocation2 + $0x80] sm:$0xff]
        %v269 = vld [vmem:[#allocation2 + $0x88] sm:$0xff]
        %v270 = vld [vmem:[#allocation2 + $0x90] sm:$0xff]
        %v271 = vld [vmem:[#allocation2 + $0x98] sm:$0xff]
        %v272 = vld [vmem:[#allocation2 + $0xa0] sm:$0xff]
        %v273 = vld [vmem:[#allocation2 + $0xa8] sm:$0xff]
        %v274 = vld [vmem:[#allocation2 + $0xb0] sm:$0xff]
        %v275 = vld [vmem:[#allocation2 + $0xb8] sm:$0xff]
        %v276 = vld [vmem:[#allocation2 + $0xc0] sm:$0xff]
        %v277 = vld [vmem:[#allocation2 + $0xc8] sm:$0xff]
        %v278 = vld [vmem:[#allocation2 + $0xd0] sm:$0xff]
        %v279 = vld [vmem:[#allocation2 + $0xd8] sm:$0xff]
        %v280 = vld [vmem:[#allocation2 + $0xe0] sm:$0xff]
        %v281 = vld [vmem:[#allocation2 + $0xe8] sm:$0xff]
        %v282 = vld [vmem:[#allocation2 + $0xf0] sm:$0xff]
        %v283 = vld [vmem:[#allocation2 + $0xf8] sm:$0xff]
        %v284 = vld [vmem:[#allocation3] sm:$0xff]
        %v285 = vld [vmem:[#allocation3 + $0x8] sm:$0xff]
        %v286 = vld [vmem:[#allocation3 + $0x10] sm:$0xff]
        %v287 = vld [vmem:[#allocation3 + $0x18] sm:$0xff]
        %v288 = vld [vmem:[#allocation3 + $0x20] sm:$0xff]
        %v289 = vld [vmem:[#allocation3 + $0x28] sm:$0xff]
        %v290 = vld [vmem:[#allocation3 + $0x30] sm:$0xff]
        %v291 = vld [vmem:[#allocation3 + $0x38] sm:$0xff]
        %v292 = vld [vmem:[#allocation3 + $0x40] sm:$0xff]
        %v293 = vld [vmem:[#allocation3 + $0x48] sm:$0xff]
        %v294 = vld [vmem:[#allocation3 + $0x50] sm:$0xff]
        %v295 = vld [vmem:[#allocation3 + $0x58] sm:$0xff]
        %v296 = vld [vmem:[#allocation3 + $0x60] sm:$0xff]
        %v297 = vld [vmem:[#allocation3 + $0x68] sm:$0xff]
        %v298 = vld [vmem:[#allocation3 + $0x70] sm:$0xff]
        %v299 = vld [vmem:[#allocation3 + $0x78] sm:$0xff]
        %v300 = vld [vmem:[#allocation3 + $0x80] sm:$0xff]
        %v301 = vld [vmem:[#allocation3 + $0x88] sm:$0xff]
        %v302 = vld [vmem:[#allocation3 + $0x90] sm:$0xff]
        %v303 = vld [vmem:[#allocation3 + $0x98] sm:$0xff]
        %v304 = vld [vmem:[#allocation3 + $0xa0] sm:$0xff]
        %v305 = vld [vmem:[#allocation3 + $0xa8] sm:$0xff]
        %v306 = vld [vmem:[#allocation3 + $0xb0] sm:$0xff]
        %v307 = vld [vmem:[#allocation3 + $0xb8] sm:$0xff]
        %v308 = vld [vmem:[#allocation3 + $0xc0] sm:$0xff]
        %v309 = vld [vmem:[#allocation3 + $0xc8] sm:$0xff]
        %v310 = vld [vmem:[#allocation3 + $0xd0] sm:$0xff]
        %v311 = vld [vmem:[#allocation3 + $0xd8] sm:$0xff]
        %v312 = vld [vmem:[#allocation3 + $0xe0] sm:$0xff]
        %v313 = vld [vmem:[#allocation3 + $0xe8] sm:$0xff]
        %v314 = vld [vmem:[#allocation3 + $0xf0] sm:$0xff]
        %v315 = vld [vmem:[#allocation3 + $0xf8] sm:$0xff]
        %v316 = vld [vmem:[%s192] sm:$0xff]
        %v317 = vld [vmem:[%s192 + $0x8] sm:$0xff]
        %v318 = vld [vmem:[%s192 + $0x10] sm:$0xff]
        %v319 = vld [vmem:[%s192 + $0x18] sm:$0xff]
        %v320 = vld [vmem:[%s192 + $0x20] sm:$0xff]
        %v321 = vld [vmem:[%s192 + $0x28] sm:$0xff]
        %v322 = vld [vmem:[%s192 + $0x30] sm:$0xff]
        %v323 = vld [vmem:[%s192 + $0x38] sm:$0xff]
        %v324 = vld [vmem:[%s192 + $0x40] sm:$0xff]
        %v325 = vld [vmem:[%s192 + $0x48] sm:$0xff]
        %v326 = vld [vmem:[%s192 + $0x50] sm:$0xff]
        %v327 = vld [vmem:[%s192 + $0x58] sm:$0xff]
        %v328 = vld [vmem:[%s192 + $0x60] sm:$0xff]
        %v329 = vld [vmem:[%s192 + $0x68] sm:$0xff]
        %v330 = vld [vmem:[%s192 + $0x70] sm:$0xff]
        %v331 = vld [vmem:[%s192 + $0x78] sm:$0xff]
        %332 = vmatprep.subr.mxu0 0.0
        %333 = vmatpush1.msra.mxu0 %v316
        %334 = vmatprep.subr.mxu0 0.0
        %335 = vmatpush1.msra.mxu0 %v317
        %336 = vmatprep.subr.mxu0 0.0
        %337 = vmatpush1.msra.mxu0 %v318
        %338 = vmatprep.subr.mxu0 0.0
        %339 = vmatpush1.msra.mxu0 %v319
        %340 = vmatprep.subr.mxu0 0.0
        %341 = vmatpush1.msra.mxu0 %v320
        %342 = vmatprep.subr.mxu0 0.0
        %343 = vmatpush1.msra.mxu0 %v321
        %344 = vmatprep.subr.mxu0 0.0
        %345 = vmatpush1.msra.mxu0 %v322
        %346 = vmatprep.subr.mxu0 0.0
        %347 = vmatpush1.msra.mxu0 %v323
        %348 = vmatprep.subr.mxu0 0.0
        %349 = vmatpush1.msra.mxu0 %v324
        %350 = vmatprep.subr.mxu0 0.0
        %351 = vmatpush1.msra.mxu0 %v325
        %352 = vmatprep.subr.mxu0 0.0
        %353 = vmatpush1.msra.mxu0 %v326
        %354 = vmatprep.subr.mxu0 0.0
        %355 = vmatpush1.msra.mxu0 %v327
        %356 = vmatprep.subr.mxu0 0.0
        %357 = vmatpush1.msra.mxu0 %v328
        %358 = vmatprep.subr.mxu0 0.0
        %359 = vmatpush1.msra.mxu0 %v329
        %360 = vmatprep.subr.mxu0 0.0
        %361 = vmatpush1.msra.mxu0 %v330
        %362 = vmatprep.subr.mxu0 0.0
        %363 = vmatpush1.msra.mxu0 %v331
        %364 = vmatprep.subr.mxu0 0.0
        %365 = vmatpush1.msra.mxu0 0.0
        %366 = vmatprep.subr.mxu0 0.0
        %367 = vmatpush1.msra.mxu0 0.0
        %368 = vmatprep.subr.mxu0 0.0
        %369 = vmatpush1.msra.mxu0 0.0
        %370 = vmatprep.subr.mxu0 0.0
        %371 = vmatpush1.msra.mxu0 0.0
        %372 = vmatprep.subr.mxu0 0.0
        %373 = vmatpush1.msra.mxu0 0.0
        %374 = vmatprep.subr.mxu0 0.0
        %375 = vmatpush1.msra.mxu0 0.0
        %376 = vmatprep.subr.mxu0 0.0
        %377 = vmatpush1.msra.mxu0 0.0
        %378 = vmatprep.subr.mxu0 0.0
        %379 = vmatpush1.msra.mxu0 0.0
        %380 = vmatprep.subr.mxu0 0.0
        %381 = vmatpush1.msra.mxu0 0.0
        %382 = vmatprep.subr.mxu0 0.0
        %383 = vmatpush1.msra.mxu0 0.0
        %384 = vmatprep.subr.mxu0 0.0
        %385 = vmatpush1.msra.mxu0 0.0
        %386 = vmatprep.subr.mxu0 0.0
        %387 = vmatpush1.msra.mxu0 0.0
        %388 = vmatprep.subr.mxu0 0.0
        %389 = vmatpush1.msra.mxu0 0.0
        %390 = vmatprep.subr.mxu0 0.0
        %391 = vmatpush1.msra.mxu0 0.0
        %392 = vmatprep.subr.mxu0 0.0
        %393 = vmatpush1.msra.mxu0 0.0
        %394 = vmatprep.subr.mxu0 0.0
        %395 = vmatpush1.msra.mxu0 0.0
        %396 = vmatprep.mubr.f32.mxu0 0.0
        %397 = vmatmul.mubr.f32.gmra.mrb[0].mxu0 %v284
        %v398 = vpop.f32.mrb[0].mxu0
        %v399 = vadd.f32 0.0, %v398
        %v400 = vpop.f32.mrb[0].mxu0
        %401 = vmatprep.mubr.f32.mxu0 0.0
        %402 = vmatmul.mubr.f32.gmra.mrb[0].mxu0 %v285
        %v403 = vpop.f32.mrb[0].mxu0
        %v404 = vadd.f32 0.0, %v403
        %v405 = vpop.f32.mrb[0].mxu0
        %406 = vmatprep.mubr.f32.mxu0 0.0
        %407 = vmatmul.mubr.f32.gmra.mrb[0].mxu0 %v286
        %v408 = vpop.f32.mrb[0].mxu0
        %v409 = vadd.f32 0.0, %v408
        %v410 = vpop.f32.mrb[0].mxu0
        %411 = vmatprep.mubr.f32.mxu0 0.0
        %412 = vmatmul.mubr.f32.gmra.mrb[0].mxu0 %v287
        %v413 = vpop.f32.mrb[0].mxu0
        %v414 = vadd.f32 0.0, %v413
        %v415 = vpop.f32.mrb[0].mxu0
        %416 = vmatprep.mubr.f32.mxu0 0.0
        %417 = vmatmul.mubr.f32.gmra.mrb[0].mxu0 %v288
        %v418 = vpop.f32.mrb[0].mxu0
        %v419 = vadd.f32 0.0, %v418
        %v420 = vpop.f32.mrb[0].mxu0
        %421 = vmatprep.mubr.f32.mxu0 0.0
        %422 = vmatmul.mubr.f32.gmra.mrb[0].mxu0 %v289
        %v423 = vpop.f32.mrb[0].mxu0
        %v424 = vadd.f32 0.0, %v423
        %v425 = vpop.f32.mrb[0].mxu0
        %426 = vmatprep.mubr.f32.mxu0 0.0
        %427 = vmatmul.mubr.f32.gmra.mrb[0].mxu0 %v290
        %v428 = vpop.f32.mrb[0].mxu0
        %v429 = vadd.f32 0.0, %v428
        %v430 = vpop.f32.mrb[0].mxu0
        %431 = vmatprep.mubr.f32.mxu0 0.0
        %432 = vmatmul.mubr.f32.gmra.mrb[0].mxu0 %v291
        %v433 = vpop.f32.mrb[0].mxu0
        %v434 = vadd.f32 0.0, %v433
        %v435 = vpop.f32.mrb[0].mxu0
        %436 = vmatprep.mubr.f32.mxu0 0.0
        %437 = vmatmul.mubr.f32.gmra.mrb[0].mxu0 %v292
        %v438 = vpop.f32.mrb[0].mxu0
        %v439 = vadd.f32 0.0, %v438
        %v440 = vpop.f32.mrb[0].mxu0
        %441 = vmatprep.mubr.f32.mxu0 0.0
        %442 = vmatmul.mubr.f32.gmra.mrb[0].mxu0 %v293
        %v443 = vpop.f32.mrb[0].mxu0
        %v444 = vadd.f32 0.0, %v443
        %v445 = vpop.f32.mrb[0].mxu0
        %446 = vmatprep.mubr.f32.mxu0 0.0
        %447 = vmatmul.mubr.f32.gmra.mrb[0].mxu0 %v294
        %v448 = vpop.f32.mrb[0].mxu0
        %v449 = vadd.f32 0.0, %v448
        %v450 = vpop.f32.mrb[0].mxu0
        %451 = vmatprep.mubr.f32.mxu0 0.0
        %452 = vmatmul.mubr.f32.gmra.mrb[0].mxu0 %v295
        %v453 = vpop.f32.mrb[0].mxu0
        %v454 = vadd.f32 0.0, %v453
        %v455 = vpop.f32.mrb[0].mxu0
        %456 = vmatprep.mubr.f32.mxu0 0.0
        %457 = vmatmul.mubr.f32.gmra.mrb[0].mxu0 %v296
        %v458 = vpop.f32.mrb[0].mxu0
        %v459 = vadd.f32 0.0, %v458
        %v460 = vpop.f32.mrb[0].mxu0
        %461 = vmatprep.mubr.f32.mxu0 0.0
        %462 = vmatmul.mubr.f32.gmra.mrb[0].mxu0 %v297
        %v463 = vpop.f32.mrb[0].mxu0
        %v464 = vadd.f32 0.0, %v463
        %v465 = vpop.f32.mrb[0].mxu0
        %466 = vmatprep.mubr.f32.mxu0 0.0
        %467 = vmatmul.mubr.f32.gmra.mrb[0].mxu0 %v298
        %v468 = vpop.f32.mrb[0].mxu0
        %v469 = vadd.f32 0.0, %v468
        %v470 = vpop.f32.mrb[0].mxu0
        %471 = vmatprep.mubr.f32.mxu0 0.0
        %472 = vmatmul.mubr.f32.gmra.mrb[0].mxu0 %v299
        %v473 = vpop.f32.mrb[0].mxu0
        %v474 = vadd.f32 0.0, %v473
        %v475 = vpop.f32.mrb[0].mxu0
        %476 = vmatprep.mubr.f32.mxu0 0.0
        %477 = vmatmul.mubr.f32.gmra.mrb[0].mxu0 %v300
        %v478 = vpop.f32.mrb[0].mxu0
        %v479 = vadd.f32 0.0, %v478
        %v480 = vpop.f32.mrb[0].mxu0
        %481 = vmatprep.mubr.f32.mxu0 0.0
        %482 = vmatmul.mubr.f32.gmra.mrb[0].mxu0 %v301
        %v483 = vpop.f32.mrb[0].mxu0
        %v484 = vadd.f32 0.0, %v483
        %v485 = vpop.f32.mrb[0].mxu0
        %486 = vmatprep.mubr.f32.mxu0 0.0
        %487 = vmatmul.mubr.f32.gmra.mrb[0].mxu0 %v302
        %v488 = vpop.f32.mrb[0].mxu0
        %v489 = vadd.f32 0.0, %v488
        %v490 = vpop.f32.mrb[0].mxu0
        %491 = vmatprep.mubr.f32.mxu0 0.0
        %492 = vmatmul.mubr.f32.gmra.mrb[0].mxu0 %v303
        %v493 = vpop.f32.mrb[0].mxu0
        %v494 = vadd.f32 0.0, %v493
        %v495 = vpop.f32.mrb[0].mxu0
        %496 = vmatprep.mubr.f32.mxu0 0.0
        %497 = vmatmul.mubr.f32.gmra.mrb[0].mxu0 %v304
        %v498 = vpop.f32.mrb[0].mxu0
        %v499 = vadd.f32 0.0, %v498
        %v500 = vpop.f32.mrb[0].mxu0
        %501 = vmatprep.mubr.f32.mxu0 0.0
        %502 = vmatmul.mubr.f32.gmra.mrb[0].mxu0 %v305
        %v503 = vpop.f32.mrb[0].mxu0
        %v504 = vadd.f32 0.0, %v503
        %v505 = vpop.f32.mrb[0].mxu0
        %506 = vmatprep.mubr.f32.mxu0 0.0
        %507 = vmatmul.mubr.f32.gmra.mrb[0].mxu0 %v306
        %v508 = vpop.f32.mrb[0].mxu0
        %v509 = vadd.f32 0.0, %v508
        %v510 = vpop.f32.mrb[0].mxu0
        %511 = vmatprep.mubr.f32.mxu0 0.0
        %512 = vmatmul.mubr.f32.gmra.mrb[0].mxu0 %v307
        %v513 = vpop.f32.mrb[0].mxu0
        %v514 = vadd.f32 0.0, %v513
        %v515 = vpop.f32.mrb[0].mxu0
        %516 = vmatprep.mubr.f32.mxu0 0.0
        %517 = vmatmul.mubr.f32.gmra.mrb[0].mxu0 %v308
        %v518 = vpop.f32.mrb[0].mxu0
        %v519 = vadd.f32 0.0, %v518
        %v520 = vpop.f32.mrb[0].mxu0
        %521 = vmatprep.mubr.f32.mxu0 0.0
        %522 = vmatmul.mubr.f32.gmra.mrb[0].mxu0 %v309
        %v523 = vpop.f32.mrb[0].mxu0
        %v524 = vadd.f32 0.0, %v523
        %v525 = vpop.f32.mrb[0].mxu0
        %526 = vmatprep.mubr.f32.mxu0 0.0
        %527 = vmatmul.mubr.f32.gmra.mrb[0].mxu0 %v310
        %v528 = vpop.f32.mrb[0].mxu0
        %v529 = vadd.f32 0.0, %v528
        %v530 = vpop.f32.mrb[0].mxu0
        %531 = vmatprep.mubr.f32.mxu0 0.0
        %532 = vmatmul.mubr.f32.gmra.mrb[0].mxu0 %v311
        %v533 = vpop.f32.mrb[0].mxu0
        %v534 = vadd.f32 0.0, %v533
        %v535 = vpop.f32.mrb[0].mxu0
        %536 = vmatprep.mubr.f32.mxu0 0.0
        %537 = vmatmul.mubr.f32.gmra.mrb[0].mxu0 %v312
        %v538 = vpop.f32.mrb[0].mxu0
        %v539 = vadd.f32 0.0, %v538
        %v540 = vpop.f32.mrb[0].mxu0
        %541 = vmatprep.mubr.f32.mxu0 0.0
        %542 = vmatmul.mubr.f32.gmra.mrb[0].mxu0 %v313
        %v543 = vpop.f32.mrb[0].mxu0
        %v544 = vadd.f32 0.0, %v543
        %v545 = vpop.f32.mrb[0].mxu0
        %546 = vmatprep.mubr.f32.mxu0 0.0
        %547 = vmatmul.mubr.f32.gmra.mrb[0].mxu0 %v314
        %v548 = vpop.f32.mrb[0].mxu0
        %v549 = vadd.f32 0.0, %v548
        %v550 = vpop.f32.mrb[0].mxu0
        %551 = vmatprep.mubr.f32.mxu0 0.0
        %552 = vmatmul.mubr.f32.gmra.mrb[0].mxu0 %v315
        %v553 = vpop.f32.mrb[0].mxu0
        %v554 = vadd.f32 0.0, %v553
        %v555 = vpop.f32.mrb[0].mxu0
        %556 = vdwg.mxu0
        %v557 = vadd.f32 %v252, %v399
        %v558 = vadd.f32 %v253, %v404
        %v559 = vadd.f32 %v254, %v409
        %v560 = vadd.f32 %v255, %v414
        %v561 = vadd.f32 %v256, %v419
        %v562 = vadd.f32 %v257, %v424
        %v563 = vadd.f32 %v258, %v429
        %v564 = vadd.f32 %v259, %v434
        %v565 = vadd.f32 %v260, %v439
        %v566 = vadd.f32 %v261, %v444
        %v567 = vadd.f32 %v262, %v449
        %v568 = vadd.f32 %v263, %v454
        %v569 = vadd.f32 %v264, %v459
        %v570 = vadd.f32 %v265, %v464
        %v571 = vadd.f32 %v266, %v469
        %v572 = vadd.f32 %v267, %v474
        %v573 = vadd.f32 %v268, %v479
        %v574 = vadd.f32 %v269, %v484
        %v575 = vadd.f32 %v270, %v489
        %v576 = vadd.f32 %v271, %v494
        %v577 = vadd.f32 %v272, %v499
        %v578 = vadd.f32 %v273, %v504
        %v579 = vadd.f32 %v274, %v509
        %v580 = vadd.f32 %v275, %v514
        %v581 = vadd.f32 %v276, %v519
        %v582 = vadd.f32 %v277, %v524
        %v583 = vadd.f32 %v278, %v529
        %v584 = vadd.f32 %v279, %v534
        %v585 = vadd.f32 %v280, %v539
        %v586 = vadd.f32 %v281, %v544
        %v587 = vadd.f32 %v282, %v549
        %v588 = vadd.f32 %v283, %v554
        %589 = vst [vmem:[#allocation2] sm:$0xff] %v557
        %590 = vst [vmem:[#allocation2 + $0x8] sm:$0xff] %v558
        %591 = vst [vmem:[#allocation2 + $0x10] sm:$0xff] %v559
        %592 = vst [vmem:[#allocation2 + $0x18] sm:$0xff] %v560
        %593 = vst [vmem:[#allocation2 + $0x20] sm:$0xff] %v561
        %594 = vst [vmem:[#allocation2 + $0x28] sm:$0xff] %v562
        %595 = vst [vmem:[#allocation2 + $0x30] sm:$0xff] %v563
        %596 = vst [vmem:[#allocation2 + $0x38] sm:$0xff] %v564
        %597 = vst [vmem:[#allocation2 + $0x40] sm:$0xff] %v565
        %598 = vst [vmem:[#allocation2 + $0x48] sm:$0xff] %v566
        %599 = vst [vmem:[#allocation2 + $0x50] sm:$0xff] %v567
        %600 = vst [vmem:[#allocation2 + $0x58] sm:$0xff] %v568
        %601 = vst [vmem:[#allocation2 + $0x60] sm:$0xff] %v569
        %602 = vst [vmem:[#allocation2 + $0x68] sm:$0xff] %v570
        %603 = vst [vmem:[#allocation2 + $0x70] sm:$0xff] %v571
        %604 = vst [vmem:[#allocation2 + $0x78] sm:$0xff] %v572
        %605 = vst [vmem:[#allocation2 + $0x80] sm:$0xff] %v573
        %606 = vst [vmem:[#allocation2 + $0x88] sm:$0xff] %v574
        %607 = vst [vmem:[#allocation2 + $0x90] sm:$0xff] %v575
        %608 = vst [vmem:[#allocation2 + $0x98] sm:$0xff] %v576
        %609 = vst [vmem:[#allocation2 + $0xa0] sm:$0xff] %v577
        %610 = vst [vmem:[#allocation2 + $0xa8] sm:$0xff] %v578
        %611 = vst [vmem:[#allocation2 + $0xb0] sm:$0xff] %v579
        %612 = vst [vmem:[#allocation2 + $0xb8] sm:$0xff] %v580
        %613 = vst [vmem:[#allocation2 + $0xc0] sm:$0xff] %v581
        %614 = vst [vmem:[#allocation2 + $0xc8] sm:$0xff] %v582
        %615 = vst [vmem:[#allocation2 + $0xd0] sm:$0xff] %v583
        %616 = vst [vmem:[#allocation2 + $0xd8] sm:$0xff] %v584
        %617 = vst [vmem:[#allocation2 + $0xe0] sm:$0xff] %v585
        %618 = vst [vmem:[#allocation2 + $0xe8] sm:$0xff] %v586
        %619 = vst [vmem:[#allocation2 + $0xf0] sm:$0xff] %v587
        %620 = vst [vmem:[#allocation2 + $0xf8] sm:$0xff] %v588
        // Predicated region
        $region41: #{tpu_custom_call.1} parent=27 // pred_check
          %p621 = pneg %p216
        $region42: #{tpu_custom_call.1} parent=27 // pred_check_branch
          %623 = sbr.rel (%p621) target = $region44
        $region43: #{tpu_custom_call.1} parent=27 // pred_region
          %v624 = vld [vmem:[#allocation2] sm:$0xff]
          %v625 = vld [vmem:[#allocation2 + $0x8] sm:$0xff]
          %v626 = vld [vmem:[#allocation2 + $0x10] sm:$0xff]
          %v627 = vld [vmem:[#allocation2 + $0x18] sm:$0xff]
          %v628 = vld [vmem:[#allocation2 + $0x20] sm:$0xff]
          %v629 = vld [vmem:[#allocation2 + $0x28] sm:$0xff]
          %v630 = vld [vmem:[#allocation2 + $0x30] sm:$0xff]
          %v631 = vld [vmem:[#allocation2 + $0x38] sm:$0xff]
          %v632 = vld [vmem:[#allocation2 + $0x40] sm:$0xff]
          %v633 = vld [vmem:[#allocation2 + $0x48] sm:$0xff]
          %v634 = vld [vmem:[#allocation2 + $0x50] sm:$0xff]
          %v635 = vld [vmem:[#allocation2 + $0x58] sm:$0xff]
          %v636 = vld [vmem:[#allocation2 + $0x60] sm:$0xff]
          %v637 = vld [vmem:[#allocation2 + $0x68] sm:$0xff]
          %v638 = vld [vmem:[#allocation2 + $0x70] sm:$0xff]
          %v639 = vld [vmem:[#allocation2 + $0x78] sm:$0xff]
          %v640 = vld [vmem:[#allocation2 + $0x80] sm:$0xff]
          %v641 = vld [vmem:[#allocation2 + $0x88] sm:$0xff]
          %v642 = vld [vmem:[#allocation2 + $0x90] sm:$0xff]
          %v643 = vld [vmem:[#allocation2 + $0x98] sm:$0xff]
          %v644 = vld [vmem:[#allocation2 + $0xa0] sm:$0xff]
          %v645 = vld [vmem:[#allocation2 + $0xa8] sm:$0xff]
          %v646 = vld [vmem:[#allocation2 + $0xb0] sm:$0xff]
          %v647 = vld [vmem:[#allocation2 + $0xb8] sm:$0xff]
          %v648 = vld [vmem:[#allocation2 + $0xc0] sm:$0xff]
          %v649 = vld [vmem:[#allocation2 + $0xc8] sm:$0xff]
          %v650 = vld [vmem:[#allocation2 + $0xd0] sm:$0xff]
          %v651 = vld [vmem:[#allocation2 + $0xd8] sm:$0xff]
          %v652 = vld [vmem:[#allocation2 + $0xe0] sm:$0xff]
          %v653 = vld [vmem:[#allocation2 + $0xe8] sm:$0xff]
          %v654 = vld [vmem:[#allocation2 + $0xf0] sm:$0xff]
          %v655 = vld [vmem:[#allocation2 + $0xf8] sm:$0xff]
          %656 = vst [vmem:[%s212] sm:$0xff] %v624
          %657 = vst [vmem:[%s212 + $0x8] sm:$0xff] %v625
          %658 = vst [vmem:[%s212 + $0x10] sm:$0xff] %v626
          %659 = vst [vmem:[%s212 + $0x18] sm:$0xff] %v627
          %660 = vst [vmem:[%s212 + $0x20] sm:$0xff] %v628
          %661 = vst [vmem:[%s212 + $0x28] sm:$0xff] %v629
          %662 = vst [vmem:[%s212 + $0x30] sm:$0xff] %v630
          %663 = vst [vmem:[%s212 + $0x38] sm:$0xff] %v631
          %664 = vst [vmem:[%s212 + $0x40] sm:$0xff] %v632
          %665 = vst [vmem:[%s212 + $0x48] sm:$0xff] %v633
          %666 = vst [vmem:[%s212 + $0x50] sm:$0xff] %v634
          %667 = vst [vmem:[%s212 + $0x58] sm:$0xff] %v635
          %668 = vst [vmem:[%s212 + $0x60] sm:$0xff] %v636
          %669 = vst [vmem:[%s212 + $0x68] sm:$0xff] %v637
          %670 = vst [vmem:[%s212 + $0x70] sm:$0xff] %v638
          %671 = vst [vmem:[%s212 + $0x78] sm:$0xff] %v639
          %672 = vst [vmem:[%s212 + $0x80] sm:$0xff] %v640
          %673 = vst [vmem:[%s212 + $0x88] sm:$0xff] %v641
          %674 = vst [vmem:[%s212 + $0x90] sm:$0xff] %v642
          %675 = vst [vmem:[%s212 + $0x98] sm:$0xff] %v643
          %676 = vst [vmem:[%s212 + $0xa0] sm:$0xff] %v644
          %677 = vst [vmem:[%s212 + $0xa8] sm:$0xff] %v645
          %678 = vst [vmem:[%s212 + $0xb0] sm:$0xff] %v646
          %679 = vst [vmem:[%s212 + $0xb8] sm:$0xff] %v647
          %680 = vst [vmem:[%s212 + $0xc0] sm:$0xff] %v648
          %681 = vst [vmem:[%s212 + $0xc8] sm:$0xff] %v649
          %682 = vst [vmem:[%s212 + $0xd0] sm:$0xff] %v650
          %683 = vst [vmem:[%s212 + $0xd8] sm:$0xff] %v651
          %684 = vst [vmem:[%s212 + $0xe0] sm:$0xff] %v652
          %685 = vst [vmem:[%s212 + $0xe8] sm:$0xff] %v653
          %686 = vst [vmem:[%s212 + $0xf0] sm:$0xff] %v654
          %687 = vst [vmem:[%s212 + $0xf8] sm:$0xff] %v655
        $region44: #{tpu_custom_call.1} parent=27 // pred_fallthru
          _
        %s688 = sand.u32 %s105, 1
        %s689 = scalar_lea.sflag [#allocation5], %s688
        %s690 = sand.u32 %s105, 1
        %s691 = smul.addr %s690, 256
        %s692 = scalar_lea.vmem [#allocation8], %s691
        // Predicated region
        $region45: #{tpu_custom_call.1} parent=27 // pred_check
          %p693 = pneg %p115
        $region46: #{tpu_custom_call.1} parent=27 // pred_check_branch
          %695 = sbr.rel (%p693) target = $region48
        $region47: #{tpu_custom_call.1} parent=27 // pred_region
          %s696 = smul.u32 32, %s25
          %s698 = ssub.s32 4096, 4096
          %699 = vsyncadd %s689, %s698
          %s700 = smul.addr %s696, 3
          %s701 = sadd.s32 %s26, %s700
          %s702 = smul.addr %s701, 128
          %s703 = scalar_lea.hbm %s2, %s702
          %s704 = sshll.u32 %s692, 4
          %s705 = int_to_ptr.vmem [resolvable:$true] %s704
          %710 = dma.vmem_to_hbm [thread:$0]  %s705, 4096, %s703, %s689, 128, 384, 8
        $region48: #{tpu_custom_call.1} parent=27 // pred_fallthru
          _
      $region28: #{tpu_custom_call.1} parent=5 // pred_fallthru
        _
      %p711 = scmp.le.s32.totalorder 2, %s15
      // Predicated region
      $region49: #{tpu_custom_call.1} parent=5 // pred_check
        %p712 = pneg %p711
      $region50: #{tpu_custom_call.1} parent=5 // pred_check_branch
        %714 = sbr.rel (%p712) target = $region52
      $region51: #{tpu_custom_call.1} parent=5 // pred_region
        %s715 = ssub.s32 %s15, 2
        // Predicated region
        $region53: #{tpu_custom_call.1} parent=51 // pred_check
          %p716 = pneg %p121
        $region54: #{tpu_custom_call.1} parent=51 // pred_check_branch
          %718 = sbr.rel (%p716) target = $region56
        $region55: #{tpu_custom_call.1} parent=51 // pred_region
          %s719 = sand.u32 %s106, 1
          %s720 = scalar_lea.sflag [#allocation5], %s719
          %s721 = sand.u32 %s106, 1
          %s722 = smul.addr %s721, 256
          %s723 = scalar_lea.vmem [#allocation8], %s722
          %724 = dma.done %s720, 4096
        $region56: #{tpu_custom_call.1} parent=51 // pred_fallthru
          _
      $region52: #{tpu_custom_call.1} parent=5 // pred_fallthru
        _
    $region6: #{tpu_custom_call.1} parent=1 // loop_footer
      %s19 = sadd.s32 1, %s15
    $region7: #{tpu_custom_call.1} parent=1 // loop_footer_branch
      %14 = sbr.rel target = $region3
    $region8: #{tpu_custom_call.1} parent=1 // loop_exit
      _
    %725 = vsyncpa [#allocation4], 1
    %s726 = scalar_lea.sflag [#allocation4], 1
    %727 = vsyncpa %s726, 1
    %728 = vsyncpa [#allocation7], 1
    %s729 = scalar_lea.sflag [#allocation7], 1
    %730 = vsyncpa %s729, 1
    %731 = vsyncpa [#allocation5], 1
    %s732 = scalar_lea.sflag [#allocation5], 1
    %733 = vsyncpa %s732, 1

</llo_original>
